<compile_context>
chip_gen: v5e
topology: v5e:2x2
jax: 0.10.0
libtpu: 0.0.40
codegen_flags: <defaults>
</compile_context>

<pallas_src>
import functools

import jax
import jax.numpy as jnp
from jax.experimental import pallas as pl
from jax.experimental.pallas import tpu as pltpu

EMBED_DIM = 200
HIDDEN_DIM = EMBED_DIM  # per DAN.__init__


def dan_kernel(x_ref, wt_ref, b_ref, o_ref):
    # x_ref:  (tm, E)  f32   raw activations (cast to bf16 here, in-kernel)
    # wt_ref: (E, H)   bf16  pre-transposed weight, resident in VMEM
    # b_ref:  (1, H)   f32   bias
    # o_ref:  (tm, H)  f32 (or bf16 if requested)
    x_bf16 = x_ref[...].astype(jnp.bfloat16)
    h = jnp.dot(x_bf16, wt_ref[...], preferred_element_type=jnp.float32)
    o_ref[...] = jnp.tanh(h + b_ref[...]).astype(o_ref.dtype)


def prepare_params(weight, bias):
    """One-time prep for the PyTorch nn.Linear(200, 200) parameters.

    weight: (hidden, embed) in PyTorch layout, bias: (hidden,).
    Returns (wt_bf16, bias_f32): W transposed to (embed, hidden) and cast to
    bf16 for the MXU; bias reshaped to (1, hidden) and kept f32.
    """
    wt = jnp.asarray(weight, jnp.float32).T.astype(jnp.bfloat16)
    b = jnp.asarray(bias, jnp.float32).reshape(1, -1)
    return wt, b


@functools.partial(jax.jit, static_argnames=("tm", "out_dtype"))
def dan_forward(x, wt, b, *, tm=512, out_dtype=jnp.float32):
    """x: (B, EMBED_DIM) f32. Returns tanh(x @ W.T + b) as (B, HIDDEN_DIM)."""
    B, E = x.shape
    H = wt.shape[1]
    vmem = pltpu.MemorySpace.VMEM

    if B <= tm:
        # Small batch: single whole-array call — no grid, no per-step overhead,
        # no wrapper-side pad/cast/slice.
        return pl.pallas_call(
            dan_kernel,
            out_shape=jax.ShapeDtypeStruct((B, H), out_dtype),
            in_specs=[
                pl.BlockSpec(memory_space=vmem),
                pl.BlockSpec(memory_space=vmem),
                pl.BlockSpec(memory_space=vmem),
            ],
            out_specs=pl.BlockSpec(memory_space=vmem),
        )(x, wt, b)

    # Batch-tiled path: weight/bias resident in VMEM (constant index_map),
    # x/out double-buffered. Final partial block: Pallas pads reads and masks
    # writes, so the out_shape is exactly (B, H) with no post-call slice.
    # If sweeping tm past ~2048 on v5e, add vmem_limit_bytes here.
    grid = (pl.cdiv(B, tm),)
    return pl.pallas_call(
        dan_kernel,
        out_shape=jax.ShapeDtypeStruct((B, H), out_dtype),
        grid=grid,
        in_specs=[
            pl.BlockSpec((tm, E), lambda i: (i, 0)),
            pl.BlockSpec((E, H), lambda i: (0, 0)),
            pl.BlockSpec((1, H), lambda i: (0, 0)),
        ],
        out_specs=pl.BlockSpec((tm, H), lambda i: (i, 0)),
        compiler_params=pltpu.CompilerParams(
            dimension_semantics=("parallel",),
        ),
    )(x, wt, b)


if __name__ == "__main__":
    key = jax.random.PRNGKey(0)
    k_x, k_w, k_b, k_x2 = jax.random.split(key, 4)

    # Deterministic params mimicking nn.Linear's uniform(-1/sqrt(E), 1/sqrt(E)).
    bound = 1.0 / (EMBED_DIM ** 0.5)
    weight = jax.random.uniform(
        k_w, (HIDDEN_DIM, EMBED_DIM), minval=-bound, maxval=bound, dtype=jnp.float32
    )
    bias = jax.random.uniform(
        k_b, (HIDDEN_DIM,), minval=-bound, maxval=bound, dtype=jnp.float32
    )

    # Transpose / cast the weight ONCE, outside the per-call path.
    wt, b = prepare_params(weight, bias)

    def ref_fn(x):
        return jnp.tanh(x @ weight.T + bias)

    # Small batch -> whole-array (no-grid) kernel path.
    batch = 8
    x_small = jax.random.normal(k_x, (batch, EMBED_DIM), dtype=jnp.float32)
    out_small = jax.block_until_ready(dan_forward(x_small, wt, b))
    assert out_small.shape == (batch, HIDDEN_DIM)
    assert jnp.allclose(out_small, ref_fn(x_small), atol=3e-2, rtol=3e-2)

    # Ragged larger batch with a small tile to exercise the batch-tiled grid
    # path (partial final block: 260 = 2*128 + 4, masked writes).
    x_big = jax.random.normal(k_x2, (260, EMBED_DIM), dtype=jnp.float32)
    out_big = jax.block_until_ready(dan_forward(x_big, wt, b, tm=128))
    assert out_big.shape == (260, HIDDEN_DIM)
    assert jnp.allclose(out_big, ref_fn(x_big), atol=3e-2, rtol=3e-2)

    print("KERNEL_OK")
</pallas_src>

<mosaic_0001>
module attributes {stable_mosaic.version = 11 : i64} {
  func.func @dan_kernel(%arg0: memref<8x200xf32, #tpu.memory_space<vmem>>, %arg1: memref<200x200xbf16, #tpu.memory_space<vmem>>, %arg2: memref<1x200xf32, #tpu.memory_space<vmem>>, %arg3: memref<8x200xf32, #tpu.memory_space<vmem>>) attributes {dimension_semantics = [], scalar_prefetch = 0 : i64, scratch_operands = 0 : i64, tpu.core_type = #tpu.core_type<tc>} {
    %c0 = arith.constant 0 : index
    %c0_0 = arith.constant 0 : index
    %0 = vector.load %arg0[%c0, %c0_0] : memref<8x200xf32, #tpu.memory_space<vmem>>, vector<8x200xf32>
    %1 = arith.truncf %0 : vector<8x200xf32> to vector<8x200xbf16>
    %c0_1 = arith.constant 0 : index
    %c0_2 = arith.constant 0 : index
    %2 = vector.load %arg1[%c0_1, %c0_2] : memref<200x200xbf16, #tpu.memory_space<vmem>>, vector<200x200xbf16>
    %cst = arith.constant dense<0.000000e+00> : vector<8x200xf32>
    %3 = tpu.matmul %1, %2, %cst {dimension_numbers = #tpu.dot_dimension_numbers<[1], [0], [0], [1], [0, 0, 1, 1], [], []>} : vector<8x200xbf16>, vector<200x200xbf16>, vector<8x200xf32> -> vector<8x200xf32>
    %c0_3 = arith.constant 0 : index
    %c0_4 = arith.constant 0 : index
    %4 = vector.load %arg2[%c0_3, %c0_4] : memref<1x200xf32, #tpu.memory_space<vmem>>, vector<1x200xf32>
    %5 = vector.broadcast %4 : vector<1x200xf32> to vector<8x200xf32>
    %6 = arith.addf %3, %5 : vector<8x200xf32>
    %7 = math.tanh %6 : vector<8x200xf32>
    %c0_5 = arith.constant 0 : index
    %c0_6 = arith.constant 0 : index
    %8 = vector.load %arg3[%c0_5, %c0_6] : memref<8x200xf32, #tpu.memory_space<vmem>>, vector<8x200xf32>
    tpu.vector_store %arg3[%c0_5, %c0_6], %7 {strides = array<i32>} : memref<8x200xf32, #tpu.memory_space<vmem>>, vector<8x200xf32>,
    return
  }
}

</mosaic_0001>

<llo_original>
// kernel: dan_forward.1
$region0: #{dan_forward.1}
  #allocation0 [shape = 'u32[]', space=smem, size = 0x4, offset = 0x4, fixed_abs, tag = 'smem constant byte address 0x4 - core index']
  #allocation1 [shape = 'u32[72,128]{1,0:T(1,128)}', space=vmem, size = 0x9000, scoped, tag = 'internal scratch']
  %s0 = inlined_call_operand.hbm [shape: f32[8,200], index: 0, kind: input, shape index: {}]
  %s1 = inlined_call_operand.hbm [shape: bf16[200,200], index: 1, kind: input, shape index: {}]
  %s2 = inlined_call_operand.hbm [shape: f32[1,200], index: 2, kind: input, shape index: {}]
  %s3 = inlined_call_operand.hbm [shape: f32[8,200], index: 3, kind: output, shape index: {}]
  %s4 = sld [smem:[#allocation0]]
  $region34: #{dan_forward.1} parent=0
    _
  %s6 = ssub.s32 1, %s4
  %s7 = scalar_select 0, %s6, %s4
  $region1: #{dan_forward.1} parent=0
    #allocation2 [shape = 'u8[8192]{0}', space=vmem, size = 0x2000, scoped, tag = 'input window, operand 0, single buffered']
    #allocation3 [shape = 's32[1]{0}', space=sflag, size = 0x4, scoped, tag = 'scoped memory for dan_forward.1']
    #allocation4 [shape = 's32[1]{0}', space=sflag, size = 0x4, scoped, tag = 'scoped memory for dan_forward.1']
    #allocation5 [shape = 'u8[102400]{0}', space=vmem, size = 0x19000, scoped, tag = 'input window, operand 1, single buffered']
    #allocation6 [shape = 's32[1]{0}', space=sflag, size = 0x4, scoped, tag = 'scoped memory for dan_forward.1']
    #allocation7 [shape = 'u8[1024]{0}', space=vmem, size = 0x400, scoped, tag = 'input window, operand 2, single buffered']
    #allocation8 [shape = 'u8[8192]{0}', space=vmem, size = 0x2000, scoped, tag = 'output window, operand 0, single buffered']
    %8 = vsyncpa [#allocation3], 0
    %9 = vsyncpa [#allocation6], 0
    %10 = vsyncpa [#allocation4], 0
    // Predicated region
    $region2: #{dan_forward.1} parent=1 // pred_check
      _
    $region3: #{dan_forward.1} parent=1 // pred_check_branch
      %12 = sbr.rel (0) target = $region5
    $region4: #{dan_forward.1} parent=1 // pred_region
      %14 = vsyncadd [#allocation3], 0
      %s16 = sshll.u32 %s0, 4
      %s17 = int_to_ptr.hbm [resolvable:$true] %s16
      %s18 = sshll.u32 [#allocation2], 4
      %s19 = int_to_ptr.vmem [resolvable:$true] %s18
      %21 = dma.hbm_to_vmem [thread:$0]  %s17, 256, %s19, [#allocation3]
    $region5: #{dan_forward.1} parent=1 // pred_fallthru
      _
    // Predicated region
    $region6: #{dan_forward.1} parent=1 // pred_check
      _
    $region7: #{dan_forward.1} parent=1 // pred_check_branch
      %23 = sbr.rel (0) target = $region9
    $region8: #{dan_forward.1} parent=1 // pred_region
      %25 = vsyncadd [#allocation6], 0
      %s26 = sshll.u32 %s1, 4
      %s27 = int_to_ptr.hbm [resolvable:$true] %s26
      %s28 = sshll.u32 [#allocation5], 4
      %s29 = int_to_ptr.vmem [resolvable:$true] %s28
      %34 = dma.hbm_to_vmem [thread:$0]  %s27, 3200, %s29, [#allocation6], 128, 128, 8
    $region9: #{dan_forward.1} parent=1 // pred_fallthru
      _
    // Predicated region
    $region10: #{dan_forward.1} parent=1 // pred_check
      _
    $region11: #{dan_forward.1} parent=1 // pred_check_branch
      %36 = sbr.rel (0) target = $region13
    $region12: #{dan_forward.1} parent=1 // pred_region
      %38 = vsyncadd [#allocation6], 0
      %s40 = sshll.u32 %s2, 4
      %s41 = int_to_ptr.hbm [resolvable:$true] %s40
      %s42 = sshll.u32 [#allocation7], 4
      %s43 = int_to_ptr.vmem [resolvable:$true] %s42
      %45 = dma.hbm_to_vmem [thread:$0]  %s41, 32, %s43, [#allocation6]
    $region13: #{dan_forward.1} parent=1 // pred_fallthru
      _
    // Predicated region
    $region14: #{dan_forward.1} parent=1 // pred_check
      _
    $region15: #{dan_forward.1} parent=1 // pred_check_branch
      %47 = sbr.rel (0) target = $region17
    $region16: #{dan_forward.1} parent=1 // pred_region
      %49 = dma.done [#allocation3], 256
    $region17: #{dan_forward.1} parent=1 // pred_fallthru
      _
    // Predicated region
    $region18: #{dan_forward.1} parent=1 // pred_check
      _
    $region19: #{dan_forward.1} parent=1 // pred_check_branch
      %51 = sbr.rel (0) target = $region21
    $region20: #{dan_forward.1} parent=1 // pred_region
      %53 = dma.done [#allocation6], 3200
    $region21: #{dan_forward.1} parent=1 // pred_fallthru
      _
    // Predicated region
    $region22: #{dan_forward.1} parent=1 // pred_check
      _
    $region23: #{dan_forward.1} parent=1 // pred_check_branch
      %55 = sbr.rel (0) target = $region25
    $region24: #{dan_forward.1} parent=1 // pred_region
      %57 = dma.done [#allocation6], 32
    $region25: #{dan_forward.1} parent=1 // pred_fallthru
      _
    %v59 = vld [vmem:[#allocation2] sm:$0xff]
    %v60 = vld [vmem:[#allocation2 + $0x8] sm:$0xff]
    %v61 = vpack.c.bf16 %v59, %v59
    %v62 = vpack.c.bf16 %v60, %v60
    %v63 = vld [vmem:[#allocation5] sm:$0xff]
    %v64 = vld [vmem:[#allocation5 + $0x8] sm:$0xff]
    %v65 = vld [vmem:[#allocation5 + $0x10] sm:$0xff]
    %v66 = vld [vmem:[#allocation5 + $0x18] sm:$0xff]
    %v67 = vld [vmem:[#allocation5 + $0x20] sm:$0xff]
    %v68 = vld [vmem:[#allocation5 + $0x28] sm:$0xff]
    %v69 = vld [vmem:[#allocation5 + $0x30] sm:$0xff]
    %v70 = vld [vmem:[#allocation5 + $0x38] sm:$0xff]
    %v71 = vld [vmem:[#allocation5 + $0x40] sm:$0xff]
    %v72 = vld [vmem:[#allocation5 + $0x48] sm:$0xff]
    %v73 = vld [vmem:[#allocation5 + $0x50] sm:$0xff]
    %v74 = vld [vmem:[#allocation5 + $0x58] sm:$0xff]
    %v75 = vld [vmem:[#allocation5 + $0x60] sm:$0xff]
    %v76 = vld [vmem:[#allocation5 + $0x68] sm:$0xff]
    %v77 = vld [vmem:[#allocation5 + $0x70] sm:$0xff]
    %v78 = vld [vmem:[#allocation5 + $0x78] sm:$0xff]
    %v79 = vld [vmem:[#allocation5 + $0x80] sm:$0xff]
    %v80 = vld [vmem:[#allocation5 + $0x88] sm:$0xff]
    %v81 = vld [vmem:[#allocation5 + $0x90] sm:$0xff]
    %v82 = vld [vmem:[#allocation5 + $0x98] sm:$0xff]
    %v83 = vld [vmem:[#allocation5 + $0xa0] sm:$0xff]
    %v84 = vld [vmem:[#allocation5 + $0xa8] sm:$0xff]
    %v85 = vld [vmem:[#allocation5 + $0xb0] sm:$0xff]
    %v86 = vld [vmem:[#allocation5 + $0xb8] sm:$0xff]
    %v87 = vld [vmem:[#allocation5 + $0xc0] sm:$0xff]
    %v88 = vld [vmem:[#allocation7] sm:$0x3]
    %v90 = vperm.slane %v88, 0
    %v91 = vperm.slane %v88, 1
    %v119 = vunpack.c.l.b16 %v63
    %v120 = vunpack.c.h.b16 %v63
    %v121 = vunpack.c.l.b16 %v64
    %v122 = vunpack.c.h.b16 %v64
    %v123 = vunpack.c.l.b16 %v65
    %v124 = vunpack.c.h.b16 %v65
    %v125 = vunpack.c.l.b16 %v66
    %v126 = vunpack.c.h.b16 %v66
    %v127 = vunpack.c.l.b16 %v67
    %v128 = vunpack.c.h.b16 %v67
    %v129 = vunpack.c.l.b16 %v68
    %v130 = vunpack.c.h.b16 %v68
    %v131 = vunpack.c.l.b16 %v69
    %v132 = vunpack.c.h.b16 %v69
    %v133 = vunpack.c.l.b16 %v70
    %v134 = vunpack.c.h.b16 %v70
    %v135 = vunpack.c.l.b16 %v71
    %v136 = vunpack.c.h.b16 %v71
    %v137 = vunpack.c.l.b16 %v72
    %v138 = vunpack.c.h.b16 %v72
    %v139 = vunpack.c.l.b16 %v73
    %v140 = vunpack.c.h.b16 %v73
    %v141 = vunpack.c.l.b16 %v74
    %v142 = vunpack.c.h.b16 %v74
    %v143 = vunpack.c.l.b16 %v75
    %v144 = vunpack.c.h.b16 %v75
    %v145 = vunpack.c.l.b16 %v76
    %v146 = vunpack.c.h.b16 %v76
    %v147 = vunpack.c.l.b16 %v77
    %v148 = vunpack.c.h.b16 %v77
    %v149 = vunpack.c.l.b16 %v78
    %v150 = vunpack.c.h.b16 %v78
    %v151 = vunpack.c.l.b16 %v79
    %v152 = vunpack.c.h.b16 %v79
    %v153 = vunpack.c.l.b16 %v80
    %v154 = vunpack.c.h.b16 %v80
    %v155 = vunpack.c.l.b16 %v81
    %v156 = vunpack.c.h.b16 %v81
    %v157 = vunpack.c.l.b16 %v82
    %v158 = vunpack.c.h.b16 %v82
    %v159 = vunpack.c.l.b16 %v83
    %v160 = vunpack.c.h.b16 %v83
    %v161 = vunpack.c.l.b16 %v84
    %v162 = vunpack.c.h.b16 %v84
    %v163 = vunpack.c.l.b16 %v85
    %v164 = vunpack.c.h.b16 %v85
    %v165 = vunpack.c.l.b16 %v86
    %v166 = vunpack.c.h.b16 %v86
    %v167 = vunpack.c.l.b16 %v87
    %v168 = vunpack.c.h.b16 %v87
    %v169 = vpack.c.b16 %v121, %v119
    %v170 = vpack.c.b16 %v122, %v120
    %v171 = vpack.c.b16 %v125, %v123
    %v172 = vpack.c.b16 %v126, %v124
    %v173 = vpack.c.b16 %v129, %v127
    %v174 = vpack.c.b16 %v130, %v128
    %v175 = vpack.c.b16 %v133, %v131
    %v176 = vpack.c.b16 %v134, %v132
    %v177 = vpack.c.b16 %v137, %v135
    %v178 = vpack.c.b16 %v138, %v136
    %v179 = vpack.c.b16 %v141, %v139
    %v180 = vpack.c.b16 %v142, %v140
    %v181 = vpack.c.b16 %v145, %v143
    %v182 = vpack.c.b16 %v146, %v144
    %v183 = vpack.c.b16 %v149, %v147
    %v184 = vpack.c.b16 %v150, %v148
    %v185 = vpack.c.b16 %v153, %v151
    %v186 = vpack.c.b16 %v154, %v152
    %v187 = vpack.c.b16 %v157, %v155
    %v188 = vpack.c.b16 %v158, %v156
    %v189 = vpack.c.b16 %v161, %v159
    %v190 = vpack.c.b16 %v162, %v160
    %v191 = vpack.c.b16 %v165, %v163
    %v192 = vpack.c.b16 %v166, %v164
    %v193 = vpack.c.b16 %v167, %v167
    %v194 = vpack.c.b16 %v168, %v168
    %vm219 = vcmask 588800
    %v221 = vsel %vm219, %v62, 0
    %vm223 = vcmask 1043456
    %v225 = vsel %vm223, %v193, 0
    %v228 = vsel %vm223, %v194, 0
    %230 = vmatpush.bf16.msra.mxu0 %v183
    %231 = vmatpush.bf16.msra.mxu0 %v181
    %232 = vmatpush.bf16.msra.mxu0 %v179
    %233 = vmatpush.bf16.msra.mxu0 %v177
    %234 = vmatpush.bf16.msra.mxu0 %v175
    %235 = vmatpush.bf16.msra.mxu0 %v173
    %236 = vmatpush.bf16.msra.mxu0 %v171
    %237 = vmatpush.bf16.msra.mxu0 %v169
    %238 = vmatmul.bf16.gmra.mxu0 %v61
    %v239 = vpop.f32.mrf.mxu0
    %v240 = vadd.f32 %v90, %v239
    %v241 = vpop.f32.mrf.mxu0
    %242 = vdwg.mxu0
    %243 = vmatpush.bf16.msra.mxu0 0
    %244 = vmatpush.bf16.msra.mxu0 0
    %245 = vmatpush.bf16.msra.mxu0 0
    %246 = vmatpush.bf16.msra.mxu0 %v225
    %247 = vmatpush.bf16.msra.mxu0 %v191
    %248 = vmatpush.bf16.msra.mxu0 %v189
    %249 = vmatpush.bf16.msra.mxu0 %v187
    %250 = vmatpush.bf16.msra.mxu0 %v185
    %251 = vmatmul.bf16.gmra.mxu0 %v221
    %v252 = vpop.f32.mrf.mxu0
    %v253 = vadd.f32 %v240, %v252
    %v254 = vpop.f32.mrf.mxu0
    %255 = vdwg.mxu0
    %256 = vmatpush.bf16.msra.mxu0 %v184
    %257 = vmatpush.bf16.msra.mxu0 %v182
    %258 = vmatpush.bf16.msra.mxu0 %v180
    %259 = vmatpush.bf16.msra.mxu0 %v178
    %260 = vmatpush.bf16.msra.mxu0 %v176
    %261 = vmatpush.bf16.msra.mxu0 %v174
    %262 = vmatpush.bf16.msra.mxu0 %v172
    %263 = vmatpush.bf16.msra.mxu0 %v170
    %264 = vmatmul.bf16.gmra.mxu0 %v61
    %v265 = vpop.f32.mrf.mxu0
    %v266 = vadd.f32 %v91, %v265
    %v267 = vpop.f32.mrf.mxu0
    %268 = vdwg.mxu0
    %269 = vmatpush.bf16.msra.mxu0 0
    %270 = vmatpush.bf16.msra.mxu0 0
    %271 = vmatpush.bf16.msra.mxu0 0
    %272 = vmatpush.bf16.msra.mxu0 %v228
    %273 = vmatpush.bf16.msra.mxu0 %v192
    %274 = vmatpush.bf16.msra.mxu0 %v190
    %275 = vmatpush.bf16.msra.mxu0 %v188
    %276 = vmatpush.bf16.msra.mxu0 %v186
    %277 = vmatmul.bf16.gmra.mxu0 %v221
    %v278 = vpop.f32.mrf.mxu0
    %v279 = vadd.f32 %v266, %v278
    %v280 = vpop.f32.mrf.mxu0
    %281 = vdwg.mxu0
    %v282 = vtanh.pop %v253
    %v283 = vtanh.pop %v279
    %284 = vst [vmem:[#allocation8] sm:$0xff] %v282
    %285 = vst.msk [vmem:[#allocation8 + $0x8] sm:$0xff] %vm219, %v283
    // Predicated region
    $region26: #{dan_forward.1} parent=1 // pred_check
      _
    $region27: #{dan_forward.1} parent=1 // pred_check_branch
      %287 = sbr.rel (0) target = $region29
    $region28: #{dan_forward.1} parent=1 // pred_region
      %289 = vsyncadd [#allocation4], 0
      %s291 = sshll.u32 [#allocation8], 4
      %s292 = int_to_ptr.vmem [resolvable:$true] %s291
      %s293 = sshll.u32 %s3, 4
      %s294 = int_to_ptr.hbm [resolvable:$true] %s293
      %296 = dma.vmem_to_hbm [thread:$0]  %s292, 256, %s294, [#allocation4]
    $region29: #{dan_forward.1} parent=1 // pred_fallthru
      _
    // Predicated region
    $region30: #{dan_forward.1} parent=1 // pred_check
      _
    $region31: #{dan_forward.1} parent=1 // pred_check_branch
      %298 = sbr.rel (0) target = $region33
    $region32: #{dan_forward.1} parent=1 // pred_region
      %300 = dma.done [#allocation4], 256
    $region33: #{dan_forward.1} parent=1 // pred_fallthru
      _
    %301 = vsyncpa [#allocation3], 1
    %302 = vsyncpa [#allocation6], 1
    %303 = vsyncpa [#allocation4], 1

</llo_original>
